<compile_context>
chip_gen: v5e
topology: v5e:2x2
jax: 0.10.0
libtpu: 0.0.40
codegen_flags: <defaults>
</compile_context>

<pallas_src>
import jax
import jax.numpy as jnp
from jax import lax
from jax.experimental import pallas as pl
from jax.experimental.pallas import tpu as pltpu


_SMEM = pltpu.MemorySpace.SMEM
_VMEM_LIMIT = 32 * 1024 * 1024       # safe scoped-VMEM budget on v5e/v6e/v7x
_TILE_BYTES = 2 * 1024 * 1024        # per data-block budget (double-buffered)


# ----------------------------- tiling helpers --------------------------------


def _pick_div(n, candidates):
    """Largest candidate that divides n, else n itself (full dim)."""
    for c in candidates:
        if c <= n and n % c == 0:
            return c
    return n


def _tiling(N, H, W):
    """Choose the (N, C, R, L) view and block sizes.

    Blocks are (n_tile, <squeezed C>, r_tile, L): the last two block dims are
    (r_tile, L) -> multiples of (8, 128) or full dims, so vector loads/stores
    are dense and unmasked; the tiny channel dim never sits on the sublane
    axis of the streamed tiles.
    """
    HW = H * W
    L = _pick_div(HW, [2048, 1024, 512, 256, 128])   # lane tile (or full HW)
    R = HW // L
    r_tile = _pick_div(R, [32, 16, 8])               # sublane tile (or full R)
    budget = max(_TILE_BYTES // (r_tile * L * 4), 1)
    n_tile = 1
    for cand in (32, 16, 8, 4, 2, 1):
        if cand <= budget and N % cand == 0:
            n_tile = cand
            break
    return L, R, r_tile, n_tile


def _x_block_spec(n_tile, r_tile, L):
    # Array view is (N, C, R, L); kernel sees a dense (n_tile, r_tile, L) tile.
    return pl.BlockSpec((n_tile, pl.Squeezed(), r_tile, L),
                        lambda c, i, j: (i, c, j, 0))


# ----------------------------- kernels ---------------------------------------


def _stats_kernel(x_ref, sum_ref, sumsq_ref, acc_s, acc_q):
    # x_ref:             (n_tile, r_tile, L) f32 tile of channel c in VMEM
    # sum_ref/sumsq_ref: (C,) f32 SMEM outputs, resident across the grid
    # acc_s/acc_q:       (r_tile, L) f32 VMEM accumulators (persist per channel)
    c = pl.program_id(0)
    i = pl.program_id(1)
    j = pl.program_id(2)

    @pl.when(jnp.logical_and(i == 0, j == 0))
    def _init():
        acc_s[...] = jnp.zeros_like(acc_s)
        acc_q[...] = jnp.zeros_like(acc_q)

    x = x_ref[...]
    # Pure VPU work per element (2 adds + 1 mul); cross-lane reduction only at
    # the per-channel finalize below.
    acc_s[...] += jnp.sum(x, axis=0)
    acc_q[...] += jnp.sum(x * x, axis=0)

    @pl.when(jnp.logical_and(i == pl.num_programs(1) - 1,
                             j == pl.num_programs(2) - 1))
    def _finalize():
        sum_ref[c] = jnp.sum(acc_s[...])
        sumsq_ref[c] = jnp.sum(acc_q[...])


def _normalize_kernel(scale_ref, shift_ref, x_ref, o_ref):
    # out = x * scale[c] + shift[c]  -- hoisted per-channel constants,
    # one FMA per element so the kernel stays cleanly HBM-bound.
    c = pl.program_id(0)
    o_ref[...] = x_ref[...] * scale_ref[c] + shift_ref[c]


# ----------------------------- wrapper ----------------------------------------


def running_mean_and_var(x, mean, var, count, *, training=True):
    """Forward pass of RunningMeanAndVar.

    Args:
      x:     (N, C, H, W) float32   -- PyTorch NCHW convention.
      mean:  (1, C, 1, 1) float32   -- running mean buffer.
      var:   (1, C, 1, 1) float32   -- running variance buffer.
      count: ()           float32   -- running count buffer.
    Returns:
      (out, new_mean, new_var, new_count) with the same shapes as the inputs.
    """
    N, C, H, W = x.shape
    HW = H * W
    M = N * HW
    L, R, r_tile, n_tile = _tiling(N, H, W)
    NT, RT = N // n_tile, R // r_tile
    grid = (C, NT, RT)

    # Free reshape (trailing-dim split only) -- no HBM relayout, no transposes.
    xv = x.astype(jnp.float32).reshape(N, C, R, L)
    x_spec = _x_block_spec(n_tile, r_tile, L)

    if training:
        # ---- phase 1: per-channel sum / sum-of-squares over (N, H, W) -------
        sums, sumsqs = pl.pallas_call(
            _stats_kernel,
            out_shape=(jax.ShapeDtypeStruct((C,), jnp.float32),
                       jax.ShapeDtypeStruct((C,), jnp.float32)),
            grid=grid,
            in_specs=[x_spec],
            out_specs=(pl.BlockSpec(memory_space=_SMEM),
                       pl.BlockSpec(memory_space=_SMEM)),
            scratch_shapes=[pltpu.VMEM((r_tile, L), jnp.float32),
                            pltpu.VMEM((r_tile, L), jnp.float32)],
            compiler_params=pltpu.CompilerParams(
                dimension_semantics=("arbitrary", "arbitrary", "arbitrary"),
                vmem_limit_bytes=_VMEM_LIMIT),
        )(xv)

        # ---- O(C) running-buffer merge (Chan update) + hoisted scale/shift --
        # Plain JAX glue: per-channel scalar rsqrt has no clean scalar-unit
        # mapping in-kernel and this is negligible next to the streaming passes.
        # TODO(synk): torch.distributed all_reduce of mean/var/count has no
        # single-device Pallas equivalent; single-process semantics implemented.
        n = jnp.float32(N)
        old_mean = mean.reshape(C).astype(jnp.float32)
        old_var = var.reshape(C).astype(jnp.float32)
        old_count = count.astype(jnp.float32)

        batch_mean = sums / M
        batch_var = sumsqs / M - batch_mean * batch_mean
        tot = old_count + n
        m2 = (old_var * old_count + batch_var * n
              + (batch_mean - old_mean) ** 2 * (old_count * n / tot))
        upd_var = m2 / tot
        upd_mean = (old_count * old_mean + n * batch_mean) / tot

        scale = lax.rsqrt(jnp.maximum(upd_var, 0.01))
        shift = -upd_mean * scale
        new_mean = upd_mean.reshape(1, C, 1, 1)
        new_var = upd_var.reshape(1, C, 1, 1)
        new_count = tot
    else:
        v = var.reshape(C).astype(jnp.float32)
        m_ = mean.reshape(C).astype(jnp.float32)
        scale = lax.rsqrt(jnp.maximum(v, 0.01))
        shift = -m_ * scale
        new_mean, new_var, new_count = mean, var, count

    # ---- phase 2: streaming normalize, one FMA per element -------------------
    out_v = pl.pallas_call(
        _normalize_kernel,
        out_shape=jax.ShapeDtypeStruct((N, C, R, L), jnp.float32),
        grid=grid,
        in_specs=[pl.BlockSpec(memory_space=_SMEM),   # scale (C,)
                  pl.BlockSpec(memory_space=_SMEM),   # shift (C,)
                  x_spec],
        out_specs=_x_block_spec(n_tile, r_tile, L),
        compiler_params=pltpu.CompilerParams(
            dimension_semantics=("parallel", "parallel", "parallel"),
            vmem_limit_bytes=_VMEM_LIMIT),
    )(scale, shift, xv)

    out = out_v.reshape(N, C, H, W)   # free reshape back, no relayout
    return out, new_mean, new_var, new_count


# ----------------------------- reference (pure JAX) ---------------------------


def _reference(x, mean, var, count, training=True):
    if training:
        N, C, H, W = x.shape
        x_cf = jnp.transpose(x, (1, 0, 2, 3)).reshape(C, -1)
        new_mean = jnp.mean(x_cf, axis=-1, keepdims=True)
        new_var = jnp.mean((x_cf - new_mean) ** 2, axis=-1, keepdims=True)
        new_count = jnp.float32(N)
        new_mean = new_mean.reshape(1, C, 1, 1)
        new_var = new_var.reshape(1, C, 1, 1)
        tot = count + new_count
        m2 = var * count + new_var * new_count + \
            (new_mean - mean) ** 2 * count * new_count / tot
        var = m2 / tot
        mean = (count * mean + new_count * new_mean) / tot
        count = tot
    inv = lax.rsqrt(jnp.maximum(var, 0.01))
    return x * inv - mean * inv, mean, var, count


# ----------------------------- main -------------------------------------------


if __name__ == "__main__":
    key = jax.random.PRNGKey(0)
    N, C, H, W = 2, 4, 16, 16
    x = jax.random.normal(key, (N, C, H, W), dtype=jnp.float32) * 3.0 + 1.5

    # Buffers as in __init__: zeros (deterministic, no checkpoint load).
    mean0 = jnp.zeros((1, C, 1, 1), jnp.float32)
    var0 = jnp.zeros((1, C, 1, 1), jnp.float32)
    count0 = jnp.zeros((), jnp.float32)

    out, new_mean, new_var, new_count = running_mean_and_var(
        x, mean0, var0, count0, training=True)
    jax.block_until_ready((out, new_mean, new_var, new_count))

    # Sanity check against a pure-JAX reference.
    ref_out, ref_mean, ref_var, ref_count = _reference(
        x, mean0, var0, count0, training=True)
    assert jnp.allclose(out, ref_out, rtol=1e-4, atol=1e-5)
    assert jnp.allclose(new_mean, ref_mean, rtol=1e-4, atol=1e-5)
    assert jnp.allclose(new_var, ref_var, rtol=1e-4, atol=1e-5)
    assert jnp.allclose(new_count, ref_count)

    # Also exercise the eval path once.
    out_eval, *_ = running_mean_and_var(x, new_mean, new_var, new_count,
                                        training=False)
    jax.block_until_ready(out_eval)
    ref_eval, *_ = _reference(x, new_mean, new_var, new_count, training=False)
    assert jnp.allclose(out_eval, ref_eval, rtol=1e-4, atol=1e-5)

    print("KERNEL_OK")
</pallas_src>

<mosaic_0001>
module attributes {stable_mosaic.version = 11 : i64} {
  func.func @_stats_kernel(%arg0: i32, %arg1: i32, %arg2: i32, %arg3: memref<2x1x1x256xf32, #tpu.memory_space<vmem>>, %arg4: memref<4xf32, #tpu.memory_space<smem>>, %arg5: memref<4xf32, #tpu.memory_space<smem>>, %arg6: memref<1x256xf32, #tpu.memory_space<vmem>>, %arg7: memref<1x256xf32, #tpu.memory_space<vmem>>) attributes {dimension_semantics = [#tpu.dimension_semantics<arbitrary>, #tpu.dimension_semantics<arbitrary>, #tpu.dimension_semantics<arbitrary>], iteration_bounds = array<i64: 4, 1, 1>, scalar_prefetch = 0 : i64, scratch_operands = 2 : i64, tpu.core_type = #tpu.core_type<tc>, window_params = [{transform_indices = @transform_0, window_bounds = array<i64: 2, 1, 1, 256>}, {transform_indices = @transform_1, window_bounds = array<i64: 4>}, {transform_indices = @transform_2, window_bounds = array<i64: 4>}]} {
    %c0_i32 = arith.constant 0 : i32
    %0 = arith.cmpi eq, %arg1, %c0_i32 : i32
    %c0_i32_0 = arith.constant 0 : i32
    %1 = arith.cmpi eq, %arg2, %c0_i32_0 : i32
    %2 = arith.andi %0, %1 : i1
    %3 = arith.extui %2 : i1 to i32
    %c0_i32_1 = arith.constant 0 : i32
    %4 = arith.cmpi ne, %3, %c0_i32_1 : i32
    scf.if %4 {
      %cst_17 = arith.constant 0.000000e+00 : f32
      %21 = vector.broadcast %cst_17 : f32 to vector<1x256xf32>
      %c0_18 = arith.constant 0 : index
      %c0_19 = arith.constant 0 : index
      %22 = vector.load %arg6[%c0_18, %c0_19] : memref<1x256xf32, #tpu.memory_space<vmem>>, vector<1x256xf32>
      tpu.vector_store %arg6[%c0_18, %c0_19], %21 {strides = array<i32>} : memref<1x256xf32, #tpu.memory_space<vmem>>, vector<1x256xf32>,
      %cst_20 = arith.constant 0.000000e+00 : f32
      %23 = vector.broadcast %cst_20 : f32 to vector<1x256xf32>
      %c0_21 = arith.constant 0 : index
      %c0_22 = arith.constant 0 : index
      %24 = vector.load %arg7[%c0_21, %c0_22] : memref<1x256xf32, #tpu.memory_space<vmem>>, vector<1x256xf32>
      tpu.vector_store %arg7[%c0_21, %c0_22], %23 {strides = array<i32>} : memref<1x256xf32, #tpu.memory_space<vmem>>, vector<1x256xf32>,
    } else {
    }
    %c0 = arith.constant 0 : index
    %c0_2 = arith.constant 0 : index
    %c0_3 = arith.constant 0 : index
    %c0_4 = arith.constant 0 : index
    %5 = vector.load %arg3[%c0, %c0_2, %c0_3, %c0_4] : memref<2x1x1x256xf32, #tpu.memory_space<vmem>>, vector<2x1x1x256xf32>
    %6 = vector.shape_cast %5 : vector<2x1x1x256xf32> to vector<2x1x256xf32>
    %c0_5 = arith.constant 0 : index
    %c0_6 = arith.constant 0 : index
    %7 = vector.load %arg6[%c0_5, %c0_6] : memref<1x256xf32, #tpu.memory_space<vmem>>, vector<1x256xf32>
    %cst = arith.constant dense<0.000000e+00> : vector<1x256xf32>
    %8 = vector.multi_reduction <add>, %6, %cst [0] : vector<2x1x256xf32> to vector<1x256xf32>
    %9 = arith.addf %7, %8 : vector<1x256xf32>
    %c0_7 = arith.constant 0 : index
    %c0_8 = arith.constant 0 : index
    %10 = vector.load %arg6[%c0_7, %c0_8] : memref<1x256xf32, #tpu.memory_space<vmem>>, vector<1x256xf32>
    tpu.vector_store %arg6[%c0_7, %c0_8], %9 {strides = array<i32>} : memref<1x256xf32, #tpu.memory_space<vmem>>, vector<1x256xf32>,
    %c0_9 = arith.constant 0 : index
    %c0_10 = arith.constant 0 : index
    %11 = vector.load %arg7[%c0_9, %c0_10] : memref<1x256xf32, #tpu.memory_space<vmem>>, vector<1x256xf32>
    %12 = arith.mulf %6, %6 : vector<2x1x256xf32>
    %cst_11 = arith.constant dense<0.000000e+00> : vector<1x256xf32>
    %13 = vector.multi_reduction <add>, %12, %cst_11 [0] : vector<2x1x256xf32> to vector<1x256xf32>
    %14 = arith.addf %11, %13 : vector<1x256xf32>
    %c0_12 = arith.constant 0 : index
    %c0_13 = arith.constant 0 : index
    %15 = vector.load %arg7[%c0_12, %c0_13] : memref<1x256xf32, #tpu.memory_space<vmem>>, vector<1x256xf32>
    tpu.vector_store %arg7[%c0_12, %c0_13], %14 {strides = array<i32>} : memref<1x256xf32, #tpu.memory_space<vmem>>, vector<1x256xf32>,
    %c0_i32_14 = arith.constant 0 : i32
    %16 = arith.cmpi eq, %arg1, %c0_i32_14 : i32
    %c0_i32_15 = arith.constant 0 : i32
    %17 = arith.cmpi eq, %arg2, %c0_i32_15 : i32
    %18 = arith.andi %16, %17 : i1
    %19 = arith.extui %18 : i1 to i32
    %c0_i32_16 = arith.constant 0 : i32
    %20 = arith.cmpi ne, %19, %c0_i32_16 : i32
    scf.if %20 {
      %c0_17 = arith.constant 0 : index
      %c0_18 = arith.constant 0 : index
      %21 = vector.load %arg6[%c0_17, %c0_18] : memref<1x256xf32, #tpu.memory_space<vmem>>, vector<1x256xf32>
      %22 = vector.shape_cast %21 : vector<1x256xf32> to vector<1x1x256xf32>
      %cst_19 = arith.constant dense<0.000000e+00> : vector<1xf32>
      %23 = vector.multi_reduction <add>, %22, %cst_19 [1, 2] : vector<1x1x256xf32> to vector<1xf32>
      %24 = vector.shape_cast %23 : vector<1xf32> to vector<1x1x1xf32>
      %25 = vector.extract %24[0, 0, 0] : f32 from vector<1x1x1xf32>
      %26 = arith.index_cast %arg0 : i32 to index
      %27 = memref.load %arg4[%26] : memref<4xf32, #tpu.memory_space<smem>>
      memref.store %25, %arg4[%26] : memref<4xf32, #tpu.memory_space<smem>>
      %c0_20 = arith.constant 0 : index
      %c0_21 = arith.constant 0 : index
      %28 = vector.load %arg7[%c0_20, %c0_21] : memref<1x256xf32, #tpu.memory_space<vmem>>, vector<1x256xf32>
      %29 = vector.shape_cast %28 : vector<1x256xf32> to vector<1x1x256xf32>
      %cst_22 = arith.constant dense<0.000000e+00> : vector<1xf32>
      %30 = vector.multi_reduction <add>, %29, %cst_22 [1, 2] : vector<1x1x256xf32> to vector<1xf32>
      %31 = vector.shape_cast %30 : vector<1xf32> to vector<1x1x1xf32>
      %32 = vector.extract %31[0, 0, 0] : f32 from vector<1x1x1xf32>
      %33 = arith.index_cast %arg0 : i32 to index
      %34 = memref.load %arg5[%33] : memref<4xf32, #tpu.memory_space<smem>>
      memref.store %32, %arg5[%33] : memref<4xf32, #tpu.memory_space<smem>>
    } else {
    }
    return
  }
  func.func @transform_0(%arg0: i32, %arg1: i32, %arg2: i32) -> (i32, i32, i32, i32) {
    %c0_i32 = arith.constant 0 : i32
    %c0_i32_0 = arith.constant 0 : i32
    return %arg1, %arg0, %arg2, %c0_i32 : i32, i32, i32, i32
  }
  func.func @transform_1(%arg0: i32, %arg1: i32, %arg2: i32) -> i32 {
    %c0_i32 = arith.constant 0 : i32
    %c0_i32_0 = arith.constant 0 : i32
    return %c0_i32 : i32
  }
  func.func @transform_2(%arg0: i32, %arg1: i32, %arg2: i32) -> i32 {
    %c0_i32 = arith.constant 0 : i32
    %c0_i32_0 = arith.constant 0 : i32
    return %c0_i32 : i32
  }
}

</mosaic_0001>

<llo_original>
// kernel: tpu_custom_call.1
$region0: #{tpu_custom_call.1}
  #allocation0 [shape = 'u32[]', space=smem, size = 0x4, offset = 0x4, fixed_abs, tag = 'smem constant byte address 0x4 - core index']
  #allocation1 [shape = 'u32[72,128]{1,0:T(1,128)}', space=vmem, size = 0x9000, scoped, tag = 'internal scratch']
  #allocation2 [shape = 'f32[1,256]{1,0:T(1,128)}', space=vmem, size = 0x400, scoped, tag = 'scratch operand']
  #allocation3 [shape = 'f32[1,256]{1,0:T(1,128)}', space=vmem, size = 0x400, scoped, tag = 'scratch operand']
  %s0 = inlined_call_operand.hbm [shape: f32[2,4,1,256], index: 0, kind: input, shape index: {}]
  %s1 = inlined_call_operand.hbm [shape: f32[4], index: 1, kind: output, shape index: {0}]
  %s2 = inlined_call_operand.hbm [shape: f32[4], index: 2, kind: output, shape index: {1}]
  %3 = xla_tuple %s1, %s2
  %s4 = sld [smem:[#allocation0]]
  $region57: #{tpu_custom_call.1} parent=0
    _
  %s6 = ssub.s32 1, %s4
  %s7 = scalar_select 0, %s6, %s4
  $region1: #{tpu_custom_call.1} parent=0
    #allocation4 [shape = 'u8[4096]{0}', space=vmem, size = 0x1000, scoped, tag = 'input window, operand 0']
    #allocation5 [shape = 's32[2]{0}', space=sflag, size = 0x8, scoped, tag = 'scoped memory for tpu_custom_call.1']
    #allocation6 [shape = 's32[2]{0}', space=sflag, size = 0x8, scoped, tag = 'scoped memory for tpu_custom_call.1']
    #allocation7 [shape = 'u8[512]{0}', space=smem, size = 0x200, scoped, tag = 'output window, operand 0, single buffered']
    #allocation8 [shape = 'u8[512]{0}', space=smem, size = 0x200, scoped, tag = 'output window, operand 1, single buffered']
    #allocation9 [shape = 's32[1]{0}', space=sflag, size = 0x4, scoped, tag = 'scoped memory for tpu_custom_call.1']
    %8 = vsyncpa [#allocation5], 0
    %s9 = scalar_lea.sflag [#allocation5], 1
    %10 = vsyncpa %s9, 0
    %11 = vsyncpa [#allocation6], 0
    %12 = vsyncpa [#allocation9], 0
    loop: start=0, step=1, limit=6
    $region2: #{tpu_custom_call.1} parent=1 // loop_pre_header
      _
    $region3: #{tpu_custom_call.1} parent=1 // loop_header
      %s14 = sphi 0, %s18
      %p15 = scmp.ge.s32.totalorder %s14, 6
      %s21 = sphi 0, %s40
      %s22 = sphi 0, %s36
      %s23 = sphi 0, %s32
      %s24 = sphi 0, %s21
      %s25 = sphi 0, %s22
      %s26 = sphi 0, %s23
      %s27 = sphi 0, %s24
      %s28 = sphi 0, %s25
      %s29 = sphi 0, %s26
      %s47 = sphi 0, %s49
      %s50 = sphi 0, %s47
      %s51 = sphi 0, %s50
      %s67 = sphi 0, %s51
      %s71 = sphi 0, %s71
      %s73 = sphi 0, %s71
      %s74 = sphi 0, %s73
      %s88 = sphi 0, %s74
      %s92 = sphi 0, %s92
      %s94 = sphi 0, %s92
      %s95 = sphi 0, %s94
      %s109 = sphi 0, %s95
    $region4: #{tpu_custom_call.1} parent=1 // loop_header_branch
      %17 = sbr.rel (%p15) target = $region8
    $region5: #{tpu_custom_call.1} parent=1 // loop_body
      %s19 = ssub.s32 %s14, 1
      %s20 = ssub.s32 %s14, 2
      %s30 = sadd.s32 1, %s23
      %p31 = scmp.ge.s32.totalorder %s30, 1
      %s32 = scalar_select %p31, 0, %s30
      %s33 = sadd.s32 1, %s22
      %s34 = scalar_select %p31, %s33, %s22
      %p35 = scmp.ge.s32.totalorder %s34, 1
      %s36 = scalar_select %p35, 0, %s34
      %s37 = sadd.s32 1, %s21
      %s38 = scalar_select %p35, %s37, %s21
      %p39 = scmp.ge.s32.totalorder %s38, 4
      %s40 = scalar_select %p39, 0, %s38
      %s41 = ssub.s32 %s22, %s36
      %s42 = ssub.s32 %s21, %s40
      %s43 = sor.u32 %s41, %s42
      %s44 = ssub.s32 %s23, %s32
      %s45 = sor.u32 %s43, %s44
      %p46 = scmp.eq.s32.totalorder %s45, 0
      %s48 = sadd.s32 %s47, 1
      %s49 = scalar_select %p46, %s47, %s48
      %p52 = pneg %p46
      %p53 = scmp.eq.s32.totalorder %s14, 3
      %p54 = por %p52, %p53
      %p55 = scmp.ne.s32.totalorder %s47, %s50
      %p56 = scmp.eq.s32.totalorder %s14, 0
      %p57 = por %p55, %p56
      %p58 = scmp.ne.s32.totalorder %s47, %s50
      %p59 = scmp.eq.s32.totalorder %s19, 3
      %p60 = por %p58, %p59
      %p61 = scmp.ne.s32.totalorder %s50, %s51
      %p62 = scmp.eq.s32.totalorder %s19, 0
      %p63 = por %p61, %p62
      %p64 = scmp.ne.s32.totalorder %s50, %s51
      %p65 = scmp.eq.s32.totalorder %s20, 3
      %p66 = por %p64, %p65
      %p68 = scmp.ne.s32.totalorder %s51, %s67
      %p69 = scmp.eq.s32.totalorder %s20, 0
      %p70 = por %p68, %p69
      %s72 = sadd.s32 %s71, 1
      %p75 = scmp.eq.s32.totalorder %s14, 3
      %p76 = scmp.ne.s32.totalorder %s71, %s73
      %p77 = scmp.eq.s32.totalorder %s14, 0
      %p78 = por %p76, %p77
      %p79 = scmp.ne.s32.totalorder %s71, %s73
      %p80 = scmp.eq.s32.totalorder %s19, 3
      %p81 = por %p79, %p80
      %p82 = scmp.ne.s32.totalorder %s73, %s74
      %p83 = scmp.eq.s32.totalorder %s19, 0
      %p84 = por %p82, %p83
      %p85 = scmp.ne.s32.totalorder %s73, %s74
      %p86 = scmp.eq.s32.totalorder %s20, 3
      %p87 = por %p85, %p86
      %p89 = scmp.ne.s32.totalorder %s74, %s88
      %p90 = scmp.eq.s32.totalorder %s20, 0
      %p91 = por %p89, %p90
      %s93 = sadd.s32 %s92, 1
      %p96 = scmp.eq.s32.totalorder %s14, 3
      %p97 = scmp.ne.s32.totalorder %s92, %s94
      %p98 = scmp.eq.s32.totalorder %s14, 0
      %p99 = por %p97, %p98
      %p100 = scmp.ne.s32.totalorder %s92, %s94
      %p101 = scmp.eq.s32.totalorder %s19, 3
      %p102 = por %p100, %p101
      %p103 = scmp.ne.s32.totalorder %s94, %s95
      %p104 = scmp.eq.s32.totalorder %s19, 0
      %p105 = por %p103, %p104
      %p106 = scmp.ne.s32.totalorder %s94, %s95
      %p107 = scmp.eq.s32.totalorder %s20, 3
      %p108 = por %p106, %p107
      %p110 = scmp.ne.s32.totalorder %s95, %s109
      %p111 = scmp.eq.s32.totalorder %s20, 0
      %p112 = por %p110, %p111
      %p113 = scmp.le.s32.totalorder 1, %s14
      %p114 = scmp.lt.s32.totalorder %s14, 5
      %p115 = pnand %p113, %p114
      %p116 = pneg %p115
      // Predicated region
      $region9: #{tpu_custom_call.1} parent=5 // pred_check
        _
      $region10: #{tpu_custom_call.1} parent=5 // pred_check_branch
        %118 = sbr.rel (%p115) target = $region12
      $region11: #{tpu_custom_call.1} parent=5 // pred_region
        %s119 = ssub.s32 %s14, 1
      $region12: #{tpu_custom_call.1} parent=5 // pred_fallthru
        _
      %p120 = scmp.lt.s32.totalorder %s14, 4
      // Predicated region
      $region13: #{tpu_custom_call.1} parent=5 // pred_check
        %p121 = pneg %p120
      $region14: #{tpu_custom_call.1} parent=5 // pred_check_branch
        %123 = sbr.rel (%p121) target = $region16
      $region15: #{tpu_custom_call.1} parent=5 // pred_region
        // Predicated region
        $region17: #{tpu_custom_call.1} parent=15 // pred_check
          %p124 = pneg %p57
        $region18: #{tpu_custom_call.1} parent=15 // pred_check_branch
          %126 = sbr.rel (%p124) target = $region20
        $region19: #{tpu_custom_call.1} parent=15 // pred_region
          %s127 = sand.u32 %s47, 1
          %s128 = scalar_lea.sflag [#allocation5], %s127
          %s129 = sand.u32 %s47, 1
          %s130 = smul.addr %s129, 4
          %s131 = scalar_lea.vmem [#allocation4], %s130
          %s132 = smul.u32 2, %s22
          %134 = vsyncadd %s128, 0
          %s135 = smul.addr %s23, 2
          %s136 = smul.addr %s21, 2
          %s137 = sadd.s32 %s135, %s136
          %s138 = smul.addr %s132, 8
          %s139 = sadd.s32 %s137, %s138
          %s140 = scalar_lea.hbm %s0, %s139
          %s141 = sshll.u32 %s140, 4
          %s142 = int_to_ptr.hbm [resolvable:$true] %s141
          %s143 = sshll.u32 %s131, 4
          %s144 = int_to_ptr.vmem [resolvable:$true] %s143
          %149 = dma.hbm_to_vmem [thread:$0]  %s142, 64, %s144, %s128, 128, 32, 2
        $region20: #{tpu_custom_call.1} parent=15 // pred_fallthru
          _
      $region16: #{tpu_custom_call.1} parent=5 // pred_fallthru
        _
      %p150 = scmp.le.s32.totalorder 1, %s14
      %p151 = scmp.lt.s32.totalorder %s14, 5
      %p152 = pnand %p150, %p151
      %p153 = pneg %p152
      // Predicated region
      $region21: #{tpu_custom_call.1} parent=5 // pred_check
        _
      $region22: #{tpu_custom_call.1} parent=5 // pred_check_branch
        %155 = sbr.rel (%p152) target = $region24
      $region23: #{tpu_custom_call.1} parent=5 // pred_region
        %s156 = ssub.s32 %s14, 1
        %s157 = sand.u32 %s50, 1
        %s158 = scalar_lea.sflag [#allocation5], %s157
        %s159 = sand.u32 %s50, 1
        %s160 = smul.addr %s159, 4
        %s161 = scalar_lea.vmem [#allocation4], %s160
        // Predicated region
        $region25: #{tpu_custom_call.1} parent=23 // pred_check
          %p162 = pneg %p63
        $region26: #{tpu_custom_call.1} parent=23 // pred_check_branch
          %164 = sbr.rel (%p162) target = $region28
        $region27: #{tpu_custom_call.1} parent=23 // pred_region
          %166 = dma.done %s158, 64
        $region28: #{tpu_custom_call.1} parent=23 // pred_fallthru
          _
        %s167 = sand.u32 %s50, 1
        %s168 = scalar_lea.sflag [#allocation5], %s167
        %s169 = sand.u32 %s50, 1
        %s170 = smul.addr %s169, 4
        %s171 = scalar_lea.vmem [#allocation4], %s170
        %p172 = pneg %p63
        %p173 = pneg %p60
        %p174 = pneg %p84
        %p175 = pneg %p81
        %p176 = pneg %p105
        %p177 = pneg %p102
        %s178 = smul.u32 2, %s25
        %p179 = scmp.eq.s32.totalorder %s25, 0
        %p180 = scmp.eq.s32.totalorder %s26, 0
        %p181 = pnand %p179, %p180
        %p182 = pneg %p181
        // Predicated region
        $region29: #{tpu_custom_call.1} parent=23 // pred_check
          _
        $region30: #{tpu_custom_call.1} parent=23 // pred_check_branch
          %184 = sbr.rel (%p181) target = $region32
        $region31: #{tpu_custom_call.1} parent=23 // pred_region
          %v185 = vlaneseq
          %vm186 = vcmp.ge.s32.totalorder %v185, 0
          %vm187 = vcmp.lt.s32.totalorder %v185, 256
          %vm188 = vmand %vm186, %vm187
          %189 = vst.msk [vmem:[#allocation2] sm:$0x3] %vm188, 0.0
          %190 = vst.msk [vmem:[#allocation3] sm:$0x3] %vm188, 0.0
        $region32: #{tpu_custom_call.1} parent=23 // pred_fallthru
          _
        %v191 = vld [vmem:[%s161] sm:$0x3]
        %v192 = vld [vmem:[%s161 + $0x2] sm:$0x3]
        %v193 = vld [vmem:[#allocation2] sm:$0x3]
        %v196 = vperm.slane %v191, 0
        %v197 = vperm.slane %v191, 1
        %v198 = vperm.slane %v192, 0
        %v199 = vperm.slane %v192, 1
        %vm204 = vcmask 1040384
        %v205 = vsel %vm204, %v196, 0.0
        %v206 = vsel %vm204, %v198, 0.0
        %v207 = vadd.f32 %v205, %v206
        %v208 = vsel %vm204, %v197, 0.0
        %v209 = vsel %vm204, %v199, 0.0
        %v210 = vadd.f32 %v208, %v209
        %v213 = vrot.slane %v210, 7
        %v214 = vsel %vm204, %v207, %v213
        %v216 = vadd.f32 %v193, %v214
        %v217 = vlaneseq
        %vm218 = vcmp.ge.s32.totalorder %v217, 0
        %vm219 = vcmp.lt.s32.totalorder %v217, 256
        %vm220 = vmand %vm218, %vm219
        %221 = vst.msk [vmem:[#allocation2] sm:$0x3] %vm220, %v216
        %v222 = vld [vmem:[#allocation3] sm:$0x3]
        %v223 = vmul.f32 %v191, %v191
        %v224 = vmul.f32 %v192, %v192
        %v227 = vperm.slane %v223, 0
        %v228 = vperm.slane %v223, 1
        %v229 = vperm.slane %v224, 0
        %v230 = vperm.slane %v224, 1
        %v235 = vsel %vm204, %v227, 0.0
        %v236 = vsel %vm204, %v229, 0.0
        %v237 = vadd.f32 %v235, %v236
        %v238 = vsel %vm204, %v228, 0.0
        %v239 = vsel %vm204, %v230, 0.0
        %v240 = vadd.f32 %v238, %v239
        %v243 = vrot.slane %v240, 7
        %v244 = vsel %vm204, %v237, %v243
        %v246 = vadd.f32 %v222, %v244
        %247 = vst.msk [vmem:[#allocation3] sm:$0x3] %vm220, %v246
        // Predicated region
        $region33: #{tpu_custom_call.1} parent=23 // pred_check
          _
        $region34: #{tpu_custom_call.1} parent=23 // pred_check_branch
          %249 = sbr.rel (%p181) target = $region36
        $region35: #{tpu_custom_call.1} parent=23 // pred_region
          %v250 = vld [vmem:[#allocation2] sm:$0x3]
          %v252 = vperm.slane %v250, 0
          %v253 = vperm.slane %v250, 1
          %v256 = vsel %vm204, %v252, 0.0
          %v257 = vsel %vm204, %v253, 0.0
          %v258 = vadd.f32 %v256, %v257
          %259 = vadd.xlane.f32.xlu0 %v258
          %v260 = vpop.xlane.xlu0 %259
          %v261 = vrot.slane %v260, 4
          %v262 = vadd.f32 %v260, %v261
          %v263 = vrot.slane %v262, 2
          %v264 = vadd.f32 %v262, %v263
          %v265 = vrot.slane %v264, 1
          %v266 = vadd.f32 %v264, %v265
          %s267 = vtos %v266
          %s268 = scalar_lea.smem [#allocation7], %s24
          %269 = sst [smem:[%s268]] %s267
          %v270 = vld [vmem:[#allocation3] sm:$0x3]
          %v272 = vperm.slane %v270, 0
          %v273 = vperm.slane %v270, 1
          %v276 = vsel %vm204, %v272, 0.0
          %v277 = vsel %vm204, %v273, 0.0
          %v278 = vadd.f32 %v276, %v277
          %279 = vadd.xlane.f32.xlu0 %v278
          %v280 = vpop.xlane.xlu0 %279
          %v281 = vrot.slane %v280, 4
          %v282 = vadd.f32 %v280, %v281
          %v283 = vrot.slane %v282, 2
          %v284 = vadd.f32 %v282, %v283
          %v285 = vrot.slane %v284, 1
          %v286 = vadd.f32 %v284, %v285
          %s287 = vtos %v286
          %s288 = scalar_lea.smem [#allocation8], %s24
          %289 = sst [smem:[%s288]] %s287
        $region36: #{tpu_custom_call.1} parent=23 // pred_fallthru
          _
        // Predicated region
        $region37: #{tpu_custom_call.1} parent=23 // pred_check
          %p290 = pneg %p81
        $region38: #{tpu_custom_call.1} parent=23 // pred_check_branch
          %292 = sbr.rel (%p290) target = $region40
        $region39: #{tpu_custom_call.1} parent=23 // pred_region
          %294 = vsyncadd [#allocation6], 0
          %s296 = sshll.u32 %s1, 4
          %s297 = int_to_ptr.hbm [resolvable:$true] %s296
          %299 = dma.smem_to_hbm [#allocation7], 16, %s297, [#allocation6]
        $region40: #{tpu_custom_call.1} parent=23 // pred_fallthru
          _
        // Predicated region
        $region41: #{tpu_custom_call.1} parent=23 // pred_check
          %p300 = pneg %p102
        $region42: #{tpu_custom_call.1} parent=23 // pred_check_branch
          %302 = sbr.rel (%p300) target = $region44
        $region43: #{tpu_custom_call.1} parent=23 // pred_region
          %304 = vsyncadd [#allocation9], 0
          %s306 = sshll.u32 %s2, 4
          %s307 = int_to_ptr.hbm [resolvable:$true] %s306
          %309 = dma.smem_to_hbm [#allocation8], 16, %s307, [#allocation9]
        $region44: #{tpu_custom_call.1} parent=23 // pred_fallthru
          _
        // Predicated region
        $region45: #{tpu_custom_call.1} parent=23 // pred_check
          %p310 = pneg %p81
        $region46: #{tpu_custom_call.1} parent=23 // pred_check_branch
          %312 = sbr.rel (%p310) target = $region48
        $region47: #{tpu_custom_call.1} parent=23 // pred_region
          %314 = dma.done [#allocation6], 16
        $region48: #{tpu_custom_call.1} parent=23 // pred_fallthru
          _
        // Predicated region
        $region49: #{tpu_custom_call.1} parent=23 // pred_check
          %p315 = pneg %p102
        $region50: #{tpu_custom_call.1} parent=23 // pred_check_branch
          %317 = sbr.rel (%p315) target = $region52
        $region51: #{tpu_custom_call.1} parent=23 // pred_region
          %319 = dma.done [#allocation9], 16
        $region52: #{tpu_custom_call.1} parent=23 // pred_fallthru
          _
        %320 = sfence
      $region24: #{tpu_custom_call.1} parent=5 // pred_fallthru
        _
      %p321 = scmp.le.s32.totalorder 2, %s14
      // Predicated region
      $region53: #{tpu_custom_call.1} parent=5 // pred_check
        %p322 = pneg %p321
      $region54: #{tpu_custom_call.1} parent=5 // pred_check_branch
        %324 = sbr.rel (%p322) target = $region56
      $region55: #{tpu_custom_call.1} parent=5 // pred_region
        %s325 = ssub.s32 %s14, 2
      $region56: #{tpu_custom_call.1} parent=5 // pred_fallthru
        _
    $region6: #{tpu_custom_call.1} parent=1 // loop_footer
      %s18 = sadd.s32 1, %s14
    $region7: #{tpu_custom_call.1} parent=1 // loop_footer_branch
      %13 = sbr.rel target = $region3
    $region8: #{tpu_custom_call.1} parent=1 // loop_exit
      _
    %326 = vsyncpa [#allocation5], 1
    %s327 = scalar_lea.sflag [#allocation5], 1
    %328 = vsyncpa %s327, 1
    %329 = vsyncpa [#allocation6], 1
    %s330 = scalar_lea.sflag [#allocation6], 1
    %331 = vsyncpa %s330, 1
    %332 = vsyncpa [#allocation9], 1

</llo_original>
